<compile_context>
chip_gen: v7x
topology: tpu7x:2x2x1
jax: 0.10.0
libtpu: 0.0.40
codegen_flags: <defaults>
</compile_context>

<pallas_src>
import functools

import jax
import jax.numpy as jnp
from jax.experimental import pallas as pl
from jax.experimental.pallas import tpu as pltpu


def _onehot_decoder_kernel(x_ref, w_ref, b_ref, s_ref, st_ref, o_ref,
                           *, n_attributes, n_values):
    # ---- Linear: (TB, E) @ (E, A*V) + (1, A*V), f32 MXU accumulation. ----
    logits = jnp.dot(x_ref[...], w_ref[...], preferred_element_type=jnp.float32)
    logits = logits + b_ref[...]

    a, v = n_attributes, n_values

    # ---- Per-segment max for numerical stability.  `a` is a small static
    # int, so this unrolls at trace time into `a` static-lane-slice reduces;
    # the broadcast back over the full (TB, A*V) lane layout goes through the
    # idle MXU via the resident 0/1 indicator S^T (A, A*V). ----
    m_cat = jnp.concatenate(
        [jnp.max(logits[:, i * v:(i + 1) * v], axis=-1, keepdims=True)
         for i in range(a)],
        axis=-1)                                                # (TB, A)
    m_full = jnp.dot(m_cat, st_ref[...],
                     preferred_element_type=jnp.float32)        # (TB, A*V)

    shifted = logits - m_full                                   # VPU
    e = jnp.exp(shifted)                                        # EUP

    # ---- Segmented exp-sum and lse broadcast as MXU matmuls with the
    # resident indicators (no 8-lane XLU sums, no lane splicing). ----
    seg_sum = jnp.dot(e, s_ref[...],
                      preferred_element_type=jnp.float32)       # (TB, A)
    lse = jnp.log(seg_sum)                                      # (TB, A)
    lse_full = jnp.dot(lse, st_ref[...],
                       preferred_element_type=jnp.float32)      # (TB, A*V)

    # ---- Exactly one full-tile, lane-dense store per grid step. ----
    o_ref[...] = (shifted - lse_full).astype(o_ref.dtype)


def _pick_batch_tile(batch, block_b):
    """Batch-tile heuristic.

    * batch > block_b: large swept tile (multiple of 8) -> amortizes the
      ~0.35 us/step pipeline overhead of this mem-bound kernel.
    * 512 <= batch <= block_b: split into two 8-aligned tiles so the
      "parallel" grid axis has >= 2 steps (v7x dual-TC sharding).
    * small batch: single full-array tile (block == full dim satisfies the
      (8,128) rule even when batch % 8 != 0).
    """
    if batch > block_b:
        return block_b
    if batch >= 512:
        half = -(-batch // 2)                # cdiv(batch, 2)
        return ((half + 7) // 8) * 8         # 8-sublane aligned -> grid of 2
    return batch


def onehot_decoder_forward(encoded, weight, bias, n_attributes, n_values,
                           *, block_b=1024):
    """encoded: (B, E) f32; weight: (E, A*V) f32; bias: (1, A*V) f32.

    Returns (B, A, V) f32 log-probabilities (log_softmax over V)."""
    B, E = encoded.shape
    AV = n_attributes * n_values
    assert weight.shape == (E, AV)
    assert bias.shape == (1, AV)
    assert block_b % 8 == 0

    tb = _pick_batch_tile(B, block_b)
    grid_b = pl.cdiv(B, tb)

    # Static 0/1 segment indicators: S (A*V, A) for segmented sums, S^T
    # (A, A*V) for broadcasting per-segment scalars back over the lanes.
    seg_ids = jnp.repeat(jnp.arange(n_attributes, dtype=jnp.int32), n_values)
    s_mat = (seg_ids[:, None] ==
             jnp.arange(n_attributes, dtype=jnp.int32)[None, :]
             ).astype(jnp.float32)                              # (AV, A)
    st_mat = s_mat.T                                            # (A, AV)

    kernel = functools.partial(
        _onehot_decoder_kernel, n_attributes=n_attributes, n_values=n_values
    )

    cost = pl.CostEstimate(
        flops=(2 * B * E * AV                       # main matmul
               + 3 * 2 * B * n_attributes * AV      # indicator matmuls
               + 4 * B * AV),                       # elementwise softmax math
        transcendentals=B * AV + B * n_attributes,  # exp + log
        bytes_accessed=4 * (B * E + E * AV + AV + B * AV
                            + 2 * AV * n_attributes),
    )

    # VMEM budget: double-buffered x/out tiles + resident operands.  Raise the
    # scoped limit when it approaches v5e's 16 MiB default so large tiles
    # still compile there (v6e/v7x defaults are 32 MiB).
    x_bytes = tb * E * 4
    o_bytes = tb * AV * 4
    resident_bytes = (E * AV + AV + 2 * AV * n_attributes) * 4
    need = 2 * (x_bytes + o_bytes) + 2 * resident_bytes + (1 << 20)
    vmem_limit = None
    if need > (12 << 20):
        vmem_limit = min(int(need * 3 // 2), 100 << 20)

    out2d = pl.pallas_call(
        kernel,
        out_shape=jax.ShapeDtypeStruct((B, AV), jnp.float32),
        grid_spec=pl.GridSpec(
            grid=(grid_b,),
            in_specs=[
                pl.BlockSpec((tb, E), lambda i: (i, 0)),     # x: tiled over batch
                pl.BlockSpec((E, AV), lambda i: (0, 0)),     # weight: resident
                pl.BlockSpec((1, AV), lambda i: (0, 0)),     # bias: resident
                pl.BlockSpec((AV, n_attributes), lambda i: (0, 0)),  # S: resident
                pl.BlockSpec((n_attributes, AV), lambda i: (0, 0)),  # S^T: resident
            ],
            # Lane-dense 2-D output block; reshape to (B, A, V) in the wrapper.
            out_specs=pl.BlockSpec((tb, AV), lambda i: (i, 0)),
        ),
        compiler_params=pltpu.CompilerParams(
            dimension_semantics=("parallel",),   # shards batch tiles across TCs on v7x
            vmem_limit_bytes=vmem_limit,
        ),
        cost_estimate=cost,
    )(encoded, weight, bias, s_mat, st_mat)

    # Free metadata reshape in XLA; keeps the kernel's store a single
    # lane-dense slab per tile.
    return out2d.reshape(B, n_attributes, n_values)


if __name__ == "__main__":
    # Module hyper-parameters (small, consistent with the forward).
    batch = 2
    embedding_size = 32
    n_attributes = 4
    n_values = 8
    av = n_attributes * n_values

    key = jax.random.PRNGKey(0)
    k_x, k_w, k_b = jax.random.split(key, 3)

    # Deterministic synthetic parameters (nn.Linear shapes: W (A*V, E), b (A*V,)),
    # stored transposed for the kernel matmul.
    encoded = jax.random.normal(k_x, (batch, embedding_size), dtype=jnp.float32)
    weight = jax.random.normal(k_w, (embedding_size, av), dtype=jnp.float32) * 0.1
    bias = jax.random.normal(k_b, (1, av), dtype=jnp.float32) * 0.1
    # TODO(synk): sos_embedding is a module parameter but is unused in forward().

    out = onehot_decoder_forward(encoded, weight, bias, n_attributes, n_values)
    out = jax.block_until_ready(out)

    # Reference check in plain JAX.
    logits_ref = encoded @ weight + bias
    logits_ref = logits_ref.reshape(batch, n_attributes, n_values)
    ref = jax.nn.log_softmax(logits_ref, axis=2)

    assert out.shape == (batch, n_attributes, n_values)
    assert jnp.allclose(out, ref, atol=1e-5, rtol=1e-5), (
        f"max abs err {jnp.max(jnp.abs(out - ref))}"
    )
    print("KERNEL_OK")
</pallas_src>

<mosaic_0001>
module attributes {stable_mosaic.version = 11 : i64} {
  func.func @_onehot_decoder_kernel(%arg0: i32, %arg1: memref<2x32xf32, #tpu.memory_space<vmem>>, %arg2: memref<32x32xf32, #tpu.memory_space<vmem>>, %arg3: memref<1x32xf32, #tpu.memory_space<vmem>>, %arg4: memref<32x4xf32, #tpu.memory_space<vmem>>, %arg5: memref<4x32xf32, #tpu.memory_space<vmem>>, %arg6: memref<2x32xf32, #tpu.memory_space<vmem>>) attributes {dimension_semantics = [#tpu.dimension_semantics<parallel>], iteration_bounds = array<i64: 1>, scalar_prefetch = 0 : i64, scratch_operands = 0 : i64, tpu.core_type = #tpu.core_type<tc>, window_params = [{transform_indices = @transform_0, window_bounds = array<i64: 2, 32>}, {pipeline_mode = #tpu.pipeline_mode<synchronous>, transform_indices = @transform_1, window_bounds = array<i64: 32, 32>}, {pipeline_mode = #tpu.pipeline_mode<synchronous>, transform_indices = @transform_2, window_bounds = array<i64: 1, 32>}, {pipeline_mode = #tpu.pipeline_mode<synchronous>, transform_indices = @transform_3, window_bounds = array<i64: 32, 4>}, {pipeline_mode = #tpu.pipeline_mode<synchronous>, transform_indices = @transform_4, window_bounds = array<i64: 4, 32>}, {transform_indices = @transform_5, window_bounds = array<i64: 2, 32>}]} {
    %c0 = arith.constant 0 : index
    %c0_0 = arith.constant 0 : index
    %0 = vector.load %arg1[%c0, %c0_0] : memref<2x32xf32, #tpu.memory_space<vmem>>, vector<2x32xf32>
    %c0_1 = arith.constant 0 : index
    %c0_2 = arith.constant 0 : index
    %1 = vector.load %arg2[%c0_1, %c0_2] : memref<32x32xf32, #tpu.memory_space<vmem>>, vector<32x32xf32>
    %cst = arith.constant dense<0.000000e+00> : vector<2x32xf32>
    %2 = tpu.matmul %0, %1, %cst {dimension_numbers = #tpu.dot_dimension_numbers<[1], [0], [0], [1], [0, 0, 1, 1], [], []>} : vector<2x32xf32>, vector<32x32xf32>, vector<2x32xf32> -> vector<2x32xf32>
    %c0_3 = arith.constant 0 : index
    %c0_4 = arith.constant 0 : index
    %3 = vector.load %arg3[%c0_3, %c0_4] : memref<1x32xf32, #tpu.memory_space<vmem>>, vector<1x32xf32>
    %4 = vector.broadcast %3 : vector<1x32xf32> to vector<2x32xf32>
    %5 = arith.addf %2, %4 : vector<2x32xf32>
    %6 = vector.extract_strided_slice %5 {offsets = [0, 0], sizes = [2, 8], strides = [1, 1]} : vector<2x32xf32> to vector<2x8xf32>
    %cst_5 = arith.constant dense<0xFF800000> : vector<2xf32>
    %7 = vector.multi_reduction <maximumf>, %6, %cst_5 [1] : vector<2x8xf32> to vector<2xf32>
    %8 = vector.shape_cast %7 : vector<2xf32> to vector<2x1xf32>
    %9 = vector.extract_strided_slice %5 {offsets = [0, 8], sizes = [2, 8], strides = [1, 1]} : vector<2x32xf32> to vector<2x8xf32>
    %cst_6 = arith.constant dense<0xFF800000> : vector<2xf32>
    %10 = vector.multi_reduction <maximumf>, %9, %cst_6 [1] : vector<2x8xf32> to vector<2xf32>
    %11 = vector.shape_cast %10 : vector<2xf32> to vector<2x1xf32>
    %12 = vector.extract_strided_slice %5 {offsets = [0, 16], sizes = [2, 8], strides = [1, 1]} : vector<2x32xf32> to vector<2x8xf32>
    %cst_7 = arith.constant dense<0xFF800000> : vector<2xf32>
    %13 = vector.multi_reduction <maximumf>, %12, %cst_7 [1] : vector<2x8xf32> to vector<2xf32>
    %14 = vector.shape_cast %13 : vector<2xf32> to vector<2x1xf32>
    %15 = vector.extract_strided_slice %5 {offsets = [0, 24], sizes = [2, 8], strides = [1, 1]} : vector<2x32xf32> to vector<2x8xf32>
    %cst_8 = arith.constant dense<0xFF800000> : vector<2xf32>
    %16 = vector.multi_reduction <maximumf>, %15, %cst_8 [1] : vector<2x8xf32> to vector<2xf32>
    %17 = vector.shape_cast %16 : vector<2xf32> to vector<2x1xf32>
    %18 = tpu.concatenate %8, %11, %14, %17 in 1 : vector<2x1xf32>, vector<2x1xf32>, vector<2x1xf32>, vector<2x1xf32> -> vector<2x4xf32>
    %c0_9 = arith.constant 0 : index
    %c0_10 = arith.constant 0 : index
    %19 = vector.load %arg5[%c0_9, %c0_10] : memref<4x32xf32, #tpu.memory_space<vmem>>, vector<4x32xf32>
    %cst_11 = arith.constant dense<0.000000e+00> : vector<2x32xf32>
    %20 = tpu.matmul %18, %19, %cst_11 {dimension_numbers = #tpu.dot_dimension_numbers<[1], [0], [0], [1], [0, 0, 1, 1], [], []>} : vector<2x4xf32>, vector<4x32xf32>, vector<2x32xf32> -> vector<2x32xf32>
    %21 = arith.subf %5, %20 : vector<2x32xf32>
    %22 = math.exp %21 : vector<2x32xf32>
    %c0_12 = arith.constant 0 : index
    %c0_13 = arith.constant 0 : index
    %23 = vector.load %arg4[%c0_12, %c0_13] : memref<32x4xf32, #tpu.memory_space<vmem>>, vector<32x4xf32>
    %cst_14 = arith.constant dense<0.000000e+00> : vector<2x4xf32>
    %24 = tpu.matmul %22, %23, %cst_14 {dimension_numbers = #tpu.dot_dimension_numbers<[1], [0], [0], [1], [0, 0, 1, 1], [], []>} : vector<2x32xf32>, vector<32x4xf32>, vector<2x4xf32> -> vector<2x4xf32>
    %25 = math.log %24 : vector<2x4xf32>
    %c0_15 = arith.constant 0 : index
    %c0_16 = arith.constant 0 : index
    %26 = vector.load %arg5[%c0_15, %c0_16] : memref<4x32xf32, #tpu.memory_space<vmem>>, vector<4x32xf32>
    %cst_17 = arith.constant dense<0.000000e+00> : vector<2x32xf32>
    %27 = tpu.matmul %25, %26, %cst_17 {dimension_numbers = #tpu.dot_dimension_numbers<[1], [0], [0], [1], [0, 0, 1, 1], [], []>} : vector<2x4xf32>, vector<4x32xf32>, vector<2x32xf32> -> vector<2x32xf32>
    %28 = arith.subf %21, %27 : vector<2x32xf32>
    %c0_18 = arith.constant 0 : index
    %c0_19 = arith.constant 0 : index
    %29 = vector.load %arg6[%c0_18, %c0_19] : memref<2x32xf32, #tpu.memory_space<vmem>>, vector<2x32xf32>
    tpu.vector_store %arg6[%c0_18, %c0_19], %28 {strides = array<i32>} : memref<2x32xf32, #tpu.memory_space<vmem>>, vector<2x32xf32>,
    return
  }
  func.func @transform_0(%arg0: i32) -> (i32, i32) {
    %c0_i32 = arith.constant 0 : i32
    %c0_i32_0 = arith.constant 0 : i32
    return %arg0, %c0_i32 : i32, i32
  }
  func.func @transform_1(%arg0: i32) -> (i32, i32) {
    %c0_i32 = arith.constant 0 : i32
    %c0_i32_0 = arith.constant 0 : i32
    %c0_i32_1 = arith.constant 0 : i32
    return %c0_i32, %c0_i32_0 : i32, i32
  }
  func.func @transform_2(%arg0: i32) -> (i32, i32) {
    %c0_i32 = arith.constant 0 : i32
    %c0_i32_0 = arith.constant 0 : i32
    %c0_i32_1 = arith.constant 0 : i32
    return %c0_i32, %c0_i32_0 : i32, i32
  }
  func.func @transform_3(%arg0: i32) -> (i32, i32) {
    %c0_i32 = arith.constant 0 : i32
    %c0_i32_0 = arith.constant 0 : i32
    %c0_i32_1 = arith.constant 0 : i32
    return %c0_i32, %c0_i32_0 : i32, i32
  }
  func.func @transform_4(%arg0: i32) -> (i32, i32) {
    %c0_i32 = arith.constant 0 : i32
    %c0_i32_0 = arith.constant 0 : i32
    %c0_i32_1 = arith.constant 0 : i32
    return %c0_i32, %c0_i32_0 : i32, i32
  }
  func.func @transform_5(%arg0: i32) -> (i32, i32) {
    %c0_i32 = arith.constant 0 : i32
    %c0_i32_0 = arith.constant 0 : i32
    return %arg0, %c0_i32 : i32, i32
  }
}

</mosaic_0001>

<llo_original>
// kernel: tpu_custom_call.1
$region0: #{tpu_custom_call.1}
  #allocation0 [shape = 'u32[]', space=smem, size = 0x4, offset = 0x4, fixed_abs, tag = 'smem constant byte address 0x4 - core index']
  #allocation1 [shape = 'u32[144,128]{1,0:T(1,128)}', space=vmem, size = 0x12000, scoped, tag = 'internal scratch']
  %s0 = inlined_call_operand.vmem [shape: f32[2,32], index: 0, kind: input, shape index: {}]
  %s1 = inlined_call_operand.vmem [shape: f32[32,32], index: 1, kind: input, shape index: {}]
  %s2 = inlined_call_operand.vmem [shape: f32[1,32], index: 2, kind: input, shape index: {}]
  %s3 = inlined_call_operand.vmem [shape: f32[32,4], index: 3, kind: input, shape index: {}]
  %s4 = inlined_call_operand.vmem [shape: f32[4,32], index: 4, kind: input, shape index: {}]
  %s5 = inlined_call_operand.hbm [shape: f32[2,32], index: 5, kind: output, shape index: {}]
  %s6 = sld [smem:[#allocation0]]
  $region30: #{tpu_custom_call.1} parent=0
    _
  %s8 = ssub.s32 1, %s6
  %s9 = scalar_select 0, %s8, %s6
  $region1: #{tpu_custom_call.1} parent=0
    #allocation2 [shape = 'u8[1024]{0}', space=vmem, size = 0x400, scoped, tag = 'output window, operand 0, single buffered']
    #allocation3 [shape = 's32[1]{0}', space=sflag, size = 0x4, scoped, tag = 'scoped memory for tpu_custom_call.1']
    %10 = vsyncpa [#allocation3], 0
    // Predicated region
    $region2: #{tpu_custom_call.1} parent=1 // pred_check
      _
    $region3: #{tpu_custom_call.1} parent=1 // pred_check_branch
      %12 = sbr.rel (0) target = $region5
    $region4: #{tpu_custom_call.1} parent=1 // pred_region
      _
    $region5: #{tpu_custom_call.1} parent=1 // pred_fallthru
      _
    // Predicated region
    $region6: #{tpu_custom_call.1} parent=1 // pred_check
      _
    $region7: #{tpu_custom_call.1} parent=1 // pred_check_branch
      %14 = sbr.rel (0) target = $region9
    $region8: #{tpu_custom_call.1} parent=1 // pred_region
      _
    $region9: #{tpu_custom_call.1} parent=1 // pred_fallthru
      _
    // Predicated region
    $region10: #{tpu_custom_call.1} parent=1 // pred_check
      _
    $region11: #{tpu_custom_call.1} parent=1 // pred_check_branch
      %16 = sbr.rel (0) target = $region13
    $region12: #{tpu_custom_call.1} parent=1 // pred_region
      _
    $region13: #{tpu_custom_call.1} parent=1 // pred_fallthru
      _
    // Predicated region
    $region14: #{tpu_custom_call.1} parent=1 // pred_check
      _
    $region15: #{tpu_custom_call.1} parent=1 // pred_check_branch
      %18 = sbr.rel (0) target = $region17
    $region16: #{tpu_custom_call.1} parent=1 // pred_region
      _
    $region17: #{tpu_custom_call.1} parent=1 // pred_fallthru
      _
    // Predicated region
    $region18: #{tpu_custom_call.1} parent=1 // pred_check
      _
    $region19: #{tpu_custom_call.1} parent=1 // pred_check_branch
      %20 = sbr.rel (0) target = $region21
    $region20: #{tpu_custom_call.1} parent=1 // pred_region
      _
    $region21: #{tpu_custom_call.1} parent=1 // pred_fallthru
      _
    %v21 = vld [vmem:[%s0] sm:$0x3]
    %v22 = vld [vmem:[%s1] sm:$0xff]
    %v23 = vld [vmem:[%s1 + $0x8] sm:$0xff]
    %v24 = vld [vmem:[%s1 + $0x10] sm:$0xff]
    %v25 = vld [vmem:[%s1 + $0x18] sm:$0xff]
    %v26 = vld [vmem:[%s2] sm:$0x1]
    %v28 = vlaneseq
    %v29 = vshrl.u32 %v28, 7
    %v30 = vsub.s32 0, %v29
    %v31 = vrot.slane %v26, %v30
    %vm33 = vcmask 261120
    %v35 = vsel %vm33, %v21, 0
    %37 = vmatprep.subr.mxu0 0.0
    %38 = vmatpush1.msra.mxu0 %v22
    %39 = vmatprep.subr.mxu0 0.0
    %40 = vmatpush1.msra.mxu0 %v23
    %41 = vmatprep.subr.mxu0 0.0
    %42 = vmatpush1.msra.mxu0 %v24
    %43 = vmatprep.subr.mxu0 0.0
    %44 = vmatpush1.msra.mxu0 %v25
    %45 = vmatprep.subr.mxu0 0.0
    %46 = vmatpush1.msra.mxu0 0.0
    %47 = vmatprep.subr.mxu0 0.0
    %48 = vmatpush1.msra.mxu0 0.0
    %49 = vmatprep.subr.mxu0 0.0
    %50 = vmatpush1.msra.mxu0 0.0
    %51 = vmatprep.subr.mxu0 0.0
    %52 = vmatpush1.msra.mxu0 0.0
    %53 = vmatprep.subr.mxu0 0.0
    %54 = vmatpush1.msra.mxu0 0.0
    %55 = vmatprep.subr.mxu0 0.0
    %56 = vmatpush1.msra.mxu0 0.0
    %57 = vmatprep.subr.mxu0 0.0
    %58 = vmatpush1.msra.mxu0 0.0
    %59 = vmatprep.subr.mxu0 0.0
    %60 = vmatpush1.msra.mxu0 0.0
    %61 = vmatprep.subr.mxu0 0.0
    %62 = vmatpush1.msra.mxu0 0.0
    %63 = vmatprep.subr.mxu0 0.0
    %64 = vmatpush1.msra.mxu0 0.0
    %65 = vmatprep.subr.mxu0 0.0
    %66 = vmatpush1.msra.mxu0 0.0
    %67 = vmatprep.subr.mxu0 0.0
    %68 = vmatpush1.msra.mxu0 0.0
    %69 = vmatprep.subr.mxu0 0.0
    %70 = vmatpush1.msra.mxu0 0.0
    %71 = vmatprep.subr.mxu0 0.0
    %72 = vmatpush1.msra.mxu0 0.0
    %73 = vmatprep.subr.mxu0 0.0
    %74 = vmatpush1.msra.mxu0 0.0
    %75 = vmatprep.subr.mxu0 0.0
    %76 = vmatpush1.msra.mxu0 0.0
    %77 = vmatprep.subr.mxu0 0.0
    %78 = vmatpush1.msra.mxu0 0.0
    %79 = vmatprep.subr.mxu0 0.0
    %80 = vmatpush1.msra.mxu0 0.0
    %81 = vmatprep.subr.mxu0 0.0
    %82 = vmatpush1.msra.mxu0 0.0
    %83 = vmatprep.subr.mxu0 0.0
    %84 = vmatpush1.msra.mxu0 0.0
    %85 = vmatprep.subr.mxu0 0.0
    %86 = vmatpush1.msra.mxu0 0.0
    %87 = vmatprep.subr.mxu0 0.0
    %88 = vmatpush1.msra.mxu0 0.0
    %89 = vmatprep.subr.mxu0 0.0
    %90 = vmatpush1.msra.mxu0 0.0
    %91 = vmatprep.subr.mxu0 0.0
    %92 = vmatpush1.msra.mxu0 0.0
    %93 = vmatprep.subr.mxu0 0.0
    %94 = vmatpush1.msra.mxu0 0.0
    %95 = vmatprep.subr.mxu0 0.0
    %96 = vmatpush1.msra.mxu0 0.0
    %97 = vmatprep.subr.mxu0 0.0
    %98 = vmatpush1.msra.mxu0 0.0
    %99 = vmatprep.subr.mxu0 0.0
    %100 = vmatpush1.msra.mxu0 0.0
    %101 = vmatprep.mubr.f32.mxu0 0.0
    %102 = vmatmul.mubr.f32.gmra.mrb[0].mxu0 %v35
    %v103 = vpop.f32.mrb[0].mxu0
    %v104 = vadd.f32 %v31, %v103
    %v105 = vpop.f32.mrb[0].mxu0
    %106 = vdwg.mxu0
    %vm107 = vcmask 58368
    %v108 = vsel %vm107, %v104, -inf
    %109 = vmax.xlane.f32.xlu0 %v108
    %v110 = vpop.xlane.xlu0 %109
    %vm111 = vcmask 123968
    %v112 = vsel %vm111, %v104, -inf
    %113 = vmax.xlane.f32.xlu0 %v112
    %v114 = vpop.xlane.xlu0 %113
    %vm115 = vcmask 189568
    %v116 = vsel %vm115, %v104, -inf
    %117 = vmax.xlane.f32.xlu0 %v116
    %v118 = vpop.xlane.xlu0 %117
    %vm119 = vcmask 255168
    %v120 = vsel %vm119, %v104, -inf
    %121 = vmax.xlane.f32.xlu0 %v120
    %v122 = vpop.xlane.xlu0 %121
    %vm123 = vcmask 7168
    %v124 = vsel %vm123, %v110, %v114
    %vm125 = vcmask 15360
    %v126 = vsel %vm125, %v124, %v118
    %vm127 = vcmask 23552
    %v128 = vsel %vm127, %v126, %v122
    %v129 = vld [vmem:[%s4] sm:$0xf]
    %vm130 = vcmask 31744
    %v132 = vsel %vm130, %v128, 0
    %vm134 = vcmask 1043456
    %v136 = vsel %vm134, %v129, 0
    %138 = vmatprep.subr.mxu0 0.0
    %139 = vmatpush1.msra.mxu0 %v136
    %140 = vmatprep.subr.mxu0 0.0
    %141 = vmatpush1.msra.mxu0 0.0
    %142 = vmatprep.subr.mxu0 0.0
    %143 = vmatpush1.msra.mxu0 0.0
    %144 = vmatprep.subr.mxu0 0.0
    %145 = vmatpush1.msra.mxu0 0.0
    %146 = vmatprep.subr.mxu0 0.0
    %147 = vmatpush1.msra.mxu0 0.0
    %148 = vmatprep.subr.mxu0 0.0
    %149 = vmatpush1.msra.mxu0 0.0
    %150 = vmatprep.subr.mxu0 0.0
    %151 = vmatpush1.msra.mxu0 0.0
    %152 = vmatprep.subr.mxu0 0.0
    %153 = vmatpush1.msra.mxu0 0.0
    %154 = vmatprep.subr.mxu0 0.0
    %155 = vmatpush1.msra.mxu0 0.0
    %156 = vmatprep.subr.mxu0 0.0
    %157 = vmatpush1.msra.mxu0 0.0
    %158 = vmatprep.subr.mxu0 0.0
    %159 = vmatpush1.msra.mxu0 0.0
    %160 = vmatprep.subr.mxu0 0.0
    %161 = vmatpush1.msra.mxu0 0.0
    %162 = vmatprep.subr.mxu0 0.0
    %163 = vmatpush1.msra.mxu0 0.0
    %164 = vmatprep.subr.mxu0 0.0
    %165 = vmatpush1.msra.mxu0 0.0
    %166 = vmatprep.subr.mxu0 0.0
    %167 = vmatpush1.msra.mxu0 0.0
    %168 = vmatprep.subr.mxu0 0.0
    %169 = vmatpush1.msra.mxu0 0.0
    %170 = vmatprep.subr.mxu0 0.0
    %171 = vmatpush1.msra.mxu0 0.0
    %172 = vmatprep.subr.mxu0 0.0
    %173 = vmatpush1.msra.mxu0 0.0
    %174 = vmatprep.subr.mxu0 0.0
    %175 = vmatpush1.msra.mxu0 0.0
    %176 = vmatprep.subr.mxu0 0.0
    %177 = vmatpush1.msra.mxu0 0.0
    %178 = vmatprep.subr.mxu0 0.0
    %179 = vmatpush1.msra.mxu0 0.0
    %180 = vmatprep.subr.mxu0 0.0
    %181 = vmatpush1.msra.mxu0 0.0
    %182 = vmatprep.subr.mxu0 0.0
    %183 = vmatpush1.msra.mxu0 0.0
    %184 = vmatprep.subr.mxu0 0.0
    %185 = vmatpush1.msra.mxu0 0.0
    %186 = vmatprep.subr.mxu0 0.0
    %187 = vmatpush1.msra.mxu0 0.0
    %188 = vmatprep.subr.mxu0 0.0
    %189 = vmatpush1.msra.mxu0 0.0
    %190 = vmatprep.subr.mxu0 0.0
    %191 = vmatpush1.msra.mxu0 0.0
    %192 = vmatprep.subr.mxu0 0.0
    %193 = vmatpush1.msra.mxu0 0.0
    %194 = vmatprep.subr.mxu0 0.0
    %195 = vmatpush1.msra.mxu0 0.0
    %196 = vmatprep.subr.mxu0 0.0
    %197 = vmatpush1.msra.mxu0 0.0
    %198 = vmatprep.subr.mxu0 0.0
    %199 = vmatpush1.msra.mxu0 0.0
    %200 = vmatprep.subr.mxu0 0.0
    %201 = vmatpush1.msra.mxu0 0.0
    %202 = vmatprep.mubr.f32.mxu0 0.0
    %203 = vmatmul.mubr.f32.gmra.mrb[0].mxu0 %v132
    %v204 = vpop.f32.mrb[0].mxu0
    %v205 = vadd.f32 0.0, %v204
    %v206 = vpop.f32.mrb[0].mxu0
    %207 = vdwg.mxu0
    %v208 = vsub.f32 %v104, %v205
    %v209 = vmul.f32 %v208, 1.442695
    %v210 = vpow.pop %v209
    %v211 = vld [vmem:[%s3] sm:$0xff]
    %v212 = vld [vmem:[%s3 + $0x8] sm:$0xff]
    %v213 = vld [vmem:[%s3 + $0x10] sm:$0xff]
    %v214 = vld [vmem:[%s3 + $0x18] sm:$0xff]
    %v216 = vsel %vm33, %v210, 0
    %218 = vmatprep.subr.mxu0 0.0
    %219 = vmatpush1.msra.mxu0 %v211
    %220 = vmatprep.subr.mxu0 0.0
    %221 = vmatpush1.msra.mxu0 %v212
    %222 = vmatprep.subr.mxu0 0.0
    %223 = vmatpush1.msra.mxu0 %v213
    %224 = vmatprep.subr.mxu0 0.0
    %225 = vmatpush1.msra.mxu0 %v214
    %226 = vmatprep.subr.mxu0 0.0
    %227 = vmatpush1.msra.mxu0 0.0
    %228 = vmatprep.subr.mxu0 0.0
    %229 = vmatpush1.msra.mxu0 0.0
    %230 = vmatprep.subr.mxu0 0.0
    %231 = vmatpush1.msra.mxu0 0.0
    %232 = vmatprep.subr.mxu0 0.0
    %233 = vmatpush1.msra.mxu0 0.0
    %234 = vmatprep.subr.mxu0 0.0
    %235 = vmatpush1.msra.mxu0 0.0
    %236 = vmatprep.subr.mxu0 0.0
    %237 = vmatpush1.msra.mxu0 0.0
    %238 = vmatprep.subr.mxu0 0.0
    %239 = vmatpush1.msra.mxu0 0.0
    %240 = vmatprep.subr.mxu0 0.0
    %241 = vmatpush1.msra.mxu0 0.0
    %242 = vmatprep.subr.mxu0 0.0
    %243 = vmatpush1.msra.mxu0 0.0
    %244 = vmatprep.subr.mxu0 0.0
    %245 = vmatpush1.msra.mxu0 0.0
    %246 = vmatprep.subr.mxu0 0.0
    %247 = vmatpush1.msra.mxu0 0.0
    %248 = vmatprep.subr.mxu0 0.0
    %249 = vmatpush1.msra.mxu0 0.0
    %250 = vmatprep.subr.mxu0 0.0
    %251 = vmatpush1.msra.mxu0 0.0
    %252 = vmatprep.subr.mxu0 0.0
    %253 = vmatpush1.msra.mxu0 0.0
    %254 = vmatprep.subr.mxu0 0.0
    %255 = vmatpush1.msra.mxu0 0.0
    %256 = vmatprep.subr.mxu0 0.0
    %257 = vmatpush1.msra.mxu0 0.0
    %258 = vmatprep.subr.mxu0 0.0
    %259 = vmatpush1.msra.mxu0 0.0
    %260 = vmatprep.subr.mxu0 0.0
    %261 = vmatpush1.msra.mxu0 0.0
    %262 = vmatprep.subr.mxu0 0.0
    %263 = vmatpush1.msra.mxu0 0.0
    %264 = vmatprep.subr.mxu0 0.0
    %265 = vmatpush1.msra.mxu0 0.0
    %266 = vmatprep.subr.mxu0 0.0
    %267 = vmatpush1.msra.mxu0 0.0
    %268 = vmatprep.subr.mxu0 0.0
    %269 = vmatpush1.msra.mxu0 0.0
    %270 = vmatprep.subr.mxu0 0.0
    %271 = vmatpush1.msra.mxu0 0.0
    %272 = vmatprep.subr.mxu0 0.0
    %273 = vmatpush1.msra.mxu0 0.0
    %274 = vmatprep.subr.mxu0 0.0
    %275 = vmatpush1.msra.mxu0 0.0
    %276 = vmatprep.subr.mxu0 0.0
    %277 = vmatpush1.msra.mxu0 0.0
    %278 = vmatprep.subr.mxu0 0.0
    %279 = vmatpush1.msra.mxu0 0.0
    %280 = vmatprep.subr.mxu0 0.0
    %281 = vmatpush1.msra.mxu0 0.0
    %282 = vmatprep.mubr.f32.mxu0 0.0
    %283 = vmatmul.mubr.f32.gmra.mrb[0].mxu0 %v216
    %v284 = vpop.f32.mrb[0].mxu0
    %v285 = vadd.f32 0.0, %v284
    %v286 = vpop.f32.mrb[0].mxu0
    %287 = vdwg.mxu0
    %v288 = vlog2.pop %v285
    %v289 = vmul.f32 %v288, 0.6931472
    %v291 = vsel %vm130, %v289, 0
    %293 = vmatprep.subr.mxu0 0.0
    %294 = vmatpush1.msra.mxu0 %v136
    %295 = vmatprep.subr.mxu0 0.0
    %296 = vmatpush1.msra.mxu0 0.0
    %297 = vmatprep.subr.mxu0 0.0
    %298 = vmatpush1.msra.mxu0 0.0
    %299 = vmatprep.subr.mxu0 0.0
    %300 = vmatpush1.msra.mxu0 0.0
    %301 = vmatprep.subr.mxu0 0.0
    %302 = vmatpush1.msra.mxu0 0.0
    %303 = vmatprep.subr.mxu0 0.0
    %304 = vmatpush1.msra.mxu0 0.0
    %305 = vmatprep.subr.mxu0 0.0
    %306 = vmatpush1.msra.mxu0 0.0
    %307 = vmatprep.subr.mxu0 0.0
    %308 = vmatpush1.msra.mxu0 0.0
    %309 = vmatprep.subr.mxu0 0.0
    %310 = vmatpush1.msra.mxu0 0.0
    %311 = vmatprep.subr.mxu0 0.0
    %312 = vmatpush1.msra.mxu0 0.0
    %313 = vmatprep.subr.mxu0 0.0
    %314 = vmatpush1.msra.mxu0 0.0
    %315 = vmatprep.subr.mxu0 0.0
    %316 = vmatpush1.msra.mxu0 0.0
    %317 = vmatprep.subr.mxu0 0.0
    %318 = vmatpush1.msra.mxu0 0.0
    %319 = vmatprep.subr.mxu0 0.0
    %320 = vmatpush1.msra.mxu0 0.0
    %321 = vmatprep.subr.mxu0 0.0
    %322 = vmatpush1.msra.mxu0 0.0
    %323 = vmatprep.subr.mxu0 0.0
    %324 = vmatpush1.msra.mxu0 0.0
    %325 = vmatprep.subr.mxu0 0.0
    %326 = vmatpush1.msra.mxu0 0.0
    %327 = vmatprep.subr.mxu0 0.0
    %328 = vmatpush1.msra.mxu0 0.0
    %329 = vmatprep.subr.mxu0 0.0
    %330 = vmatpush1.msra.mxu0 0.0
    %331 = vmatprep.subr.mxu0 0.0
    %332 = vmatpush1.msra.mxu0 0.0
    %333 = vmatprep.subr.mxu0 0.0
    %334 = vmatpush1.msra.mxu0 0.0
    %335 = vmatprep.subr.mxu0 0.0
    %336 = vmatpush1.msra.mxu0 0.0
    %337 = vmatprep.subr.mxu0 0.0
    %338 = vmatpush1.msra.mxu0 0.0
    %339 = vmatprep.subr.mxu0 0.0
    %340 = vmatpush1.msra.mxu0 0.0
    %341 = vmatprep.subr.mxu0 0.0
    %342 = vmatpush1.msra.mxu0 0.0
    %343 = vmatprep.subr.mxu0 0.0
    %344 = vmatpush1.msra.mxu0 0.0
    %345 = vmatprep.subr.mxu0 0.0
    %346 = vmatpush1.msra.mxu0 0.0
    %347 = vmatprep.subr.mxu0 0.0
    %348 = vmatpush1.msra.mxu0 0.0
    %349 = vmatprep.subr.mxu0 0.0
    %350 = vmatpush1.msra.mxu0 0.0
    %351 = vmatprep.subr.mxu0 0.0
    %352 = vmatpush1.msra.mxu0 0.0
    %353 = vmatprep.subr.mxu0 0.0
    %354 = vmatpush1.msra.mxu0 0.0
    %355 = vmatprep.subr.mxu0 0.0
    %356 = vmatpush1.msra.mxu0 0.0
    %357 = vmatprep.mubr.f32.mxu0 0.0
    %358 = vmatmul.mubr.f32.gmra.mrb[0].mxu0 %v291
    %v359 = vpop.f32.mrb[0].mxu0
    %v360 = vadd.f32 0.0, %v359
    %v361 = vpop.f32.mrb[0].mxu0
    %362 = vdwg.mxu0
    %v363 = vsub.f32 %v208, %v360
    %vm364 = vcmask 254976
    %365 = vst.msk [vmem:[#allocation2] sm:$0x3] %vm364, %v363
    // Predicated region
    $region22: #{tpu_custom_call.1} parent=1 // pred_check
      _
    $region23: #{tpu_custom_call.1} parent=1 // pred_check_branch
      %367 = sbr.rel (0) target = $region25
    $region24: #{tpu_custom_call.1} parent=1 // pred_region
      %s369 = ssub.s32 32, 32
      %370 = vsyncadd [#allocation3], %s369
      %s372 = sshll.u32 [#allocation2], 4
      %s373 = int_to_ptr.vmem [resolvable:$true] %s372
      %375 = dma.vmem_to_hbm [thread:$0]  %s373, 32, %s5, [#allocation3]
    $region25: #{tpu_custom_call.1} parent=1 // pred_fallthru
      _
    // Predicated region
    $region26: #{tpu_custom_call.1} parent=1 // pred_check
      _
    $region27: #{tpu_custom_call.1} parent=1 // pred_check_branch
      %377 = sbr.rel (0) target = $region29
    $region28: #{tpu_custom_call.1} parent=1 // pred_region
      %378 = dma.done [#allocation3], 32
    $region29: #{tpu_custom_call.1} parent=1 // pred_fallthru
      _
    %379 = vsyncpa [#allocation3], 1

</llo_original>
